<compile_context>
chip_gen: v5e
topology: v5e:2x2
jax: 0.10.0
libtpu: 0.0.40
codegen_flags: <defaults>
</compile_context>

<pallas_src>
import functools

import jax
import jax.numpy as jnp
from jax.experimental import pallas as pl
from jax.experimental.pallas import tpu as pltpu


# ----------------------------- kernel ---------------------------------------

def dueling_kernel(obs_ref, w1_ref, b1_ref, wvq_ref, bvq_ref,
                   whead_ref, bhead_ref, out_ref):
    # MXU operand dtype (f32 or bf16); accumulation is always f32.
    cd = wvq_ref.dtype

    # fc1 + relu
    y = jnp.dot(obs_ref[...], w1_ref[...],
                preferred_element_type=jnp.float32) + b1_ref[...]
    y = jnp.maximum(y, 0.0)

    # fused fc_value | fc_q  (H -> 2H), relu on both halves at once
    h = jnp.dot(y.astype(cd), wvq_ref[...],
                preferred_element_type=jnp.float32) + bvq_ref[...]
    h = jnp.maximum(h, 0.0)                       # (TB, 2H): [v_act | q_act]

    # fused head: (TB, 2H) @ (2H, A).  Value is folded into every column and the
    # dueling mean into the q weights, so this IS the final logits tile.
    out_ref[...] = jnp.dot(h.astype(cd), whead_ref[...],
                           preferred_element_type=jnp.float32) + bhead_ref[...]


# --------------------------- wrapper / fusion --------------------------------

def fuse_params(params, *, use_bf16=True):
    """Fold dueling mean + value broadcast into the head weights and fuse the two
    hidden layers. Call once per parameter update (not per forward)."""
    H = params["w1"].shape[1]
    A = params["wqo"].shape[1]

    # dueling mean folded into the q head (exact: q is linear in its weights)
    wqo_c = params["wqo"] - params["wqo"].mean(axis=1, keepdims=True)    # (H, A)
    bqo_c = params["bqo"] - params["bqo"].mean(axis=1, keepdims=True)    # (1, A)

    # fc_value / fc_q fused into one (H, 2H) weight
    wvq = jnp.concatenate([params["wv"], params["wq"]], axis=1)          # (H, 2H)
    bvq = jnp.concatenate([params["bv"], params["bq"]], axis=1)          # (1, 2H)

    # value head broadcast into every q column  ->  (2H, A) head, plain store in kernel
    w_head = jnp.concatenate(
        [jnp.broadcast_to(params["wvo"], (H, A)), wqo_c], axis=0)        # (2H, A)
    b_head = params["bvo"] + bqo_c                                       # (1, A)

    mxu = jnp.bfloat16 if use_bf16 else jnp.float32
    return dict(
        w1=params["w1"].astype(mxu),     b1=params["b1"].astype(jnp.float32),
        wvq=wvq.astype(mxu),             bvq=bvq.astype(jnp.float32),
        w_head=w_head.astype(mxu),       b_head=b_head.astype(jnp.float32),
    )


def _tile_batch(B, cap):
    """Pick (tile_b, grid_len) for the batch axis. No padding: the last grid block
    may be partial (Pallas masks the tail output writes; rows are independent)."""
    if B <= cap:
        return B, 1
    n = pl.cdiv(B, cap)
    if n % 2:                       # even grid length -> both v7x TensorCores busy
        n += 1
    tb = pl.cdiv(B, n)
    tb = ((tb + 7) // 8) * 8        # sublane-align the block's second-to-last dim
    return tb, pl.cdiv(B, tb)


@functools.partial(jax.jit, static_argnames=("tile_cap",))
def dueling_forward(obs, fused, *, tile_cap=2048):
    """obs: (B, D) float32; fused: output of fuse_params(). Returns (B, A) f32 logits."""
    B, D = obs.shape
    A = fused["w_head"].shape[1]
    obs = obs.astype(fused["w1"].dtype)         # bf16 obs halves the dominant input DMA
    tb, grid_len = _tile_batch(B, tile_cap)

    def resident(x):  # same block every grid step -> DMA'd into VMEM exactly once
        return pl.BlockSpec(x.shape, lambda i: (0, 0))

    return pl.pallas_call(
        dueling_kernel,
        out_shape=jax.ShapeDtypeStruct((B, A), jnp.float32),
        grid=(grid_len,),
        in_specs=[
            pl.BlockSpec((tb, D), lambda i: (i, 0)),     # obs tile (pipelined)
            resident(fused["w1"]), resident(fused["b1"]),
            resident(fused["wvq"]), resident(fused["bvq"]),
            resident(fused["w_head"]), resident(fused["b_head"]),
        ],
        out_specs=pl.BlockSpec((tb, A), lambda i: (i, 0)),
        compiler_params=pltpu.CompilerParams(
            dimension_semantics=("parallel",),
            vmem_limit_bytes=32 * 1024 * 1024),
    )(obs, fused["w1"], fused["b1"], fused["wvq"], fused["bvq"],
      fused["w_head"], fused["b_head"])


# ------------------------- init + pure-JAX reference -------------------------

def init_params(key, state_dim, action_dim, hidden=128):
    """Deterministic synthetic init (uniform +-1/sqrt(fan_in), like torch defaults)."""
    def linear(key, fan_in, fan_out):
        kw, kb = jax.random.split(key)
        bound = 1.0 / jnp.sqrt(jnp.asarray(fan_in, jnp.float32))
        w = jax.random.uniform(kw, (fan_in, fan_out), jnp.float32, -bound, bound)
        b = jax.random.uniform(kb, (1, fan_out), jnp.float32, -bound, bound)
        return w, b

    k1, k2, k3, k4, k5 = jax.random.split(key, 5)
    w1, b1 = linear(k1, state_dim, hidden)     # fc1
    wv, bv = linear(k2, hidden, hidden)        # fc_value
    wq, bq = linear(k3, hidden, hidden)        # fc_q
    wvo, bvo = linear(k4, hidden, 1)           # value
    wqo, bqo = linear(k5, hidden, action_dim)  # q
    return dict(w1=w1, b1=b1, wv=wv, bv=bv, wq=wq, bq=bq,
                wvo=wvo, bvo=bvo, wqo=wqo, bqo=bqo)


def reference_forward(obs, p):
    """Pure-JAX reference mirroring the PyTorch module."""
    y = jnp.maximum(obs @ p["w1"] + p["b1"], 0.0)
    v = jnp.maximum(y @ p["wv"] + p["bv"], 0.0)
    qh = jnp.maximum(y @ p["wq"] + p["bq"], 0.0)
    value = v @ p["wvo"] + p["bvo"]
    q = qh @ p["wqo"] + p["bqo"]
    return q - q.mean(axis=1, keepdims=True) + value


# ----------------------------------- main ------------------------------------

if __name__ == "__main__":
    # Module-implied small shapes: state_shape=(16,), action_shape=(8,), batch=2
    D, A = 16, 8
    key = jax.random.PRNGKey(0)
    k_obs, k_par, k_big = jax.random.split(key, 3)
    params = init_params(k_par, D, A)

    fused_f32 = fuse_params(params, use_bf16=False)   # exact-semantics path
    fused_bf16 = fuse_params(params)                  # default inference path (bf16 MXU)

    # 1) tiny batch, f32 path: exact-semantics check (single tile, grid=1)
    obs_small = jax.random.normal(k_obs, (2, D), jnp.float32)
    out_small = jax.block_until_ready(dueling_forward(obs_small, fused_f32))
    ref_small = reference_forward(obs_small, params)
    assert out_small.shape == (2, A)
    assert jnp.allclose(out_small, ref_small, atol=1e-4, rtol=1e-4), \
        "f32 small-batch mismatch vs reference"

    # 2) multi-tile batch with a partial edge block (no padding), f32 path.
    #    tile_cap=256 -> even grid length with a masked partial last tile.
    obs_big = jax.random.normal(k_big, (1030, D), jnp.float32)
    out_big = jax.block_until_ready(
        dueling_forward(obs_big, fused_f32, tile_cap=256))
    ref_big = reference_forward(obs_big, params)
    assert out_big.shape == (1030, A)
    assert jnp.allclose(out_big, ref_big, atol=1e-4, rtol=1e-4), \
        "f32 tiled-batch mismatch vs reference"

    # 3) default path: bf16 MXU operands (f32 accumulation), default tile cap
    out_bf16 = jax.block_until_ready(dueling_forward(obs_big, fused_bf16))
    assert out_bf16.shape == (1030, A)
    assert jnp.allclose(out_bf16, ref_big, atol=1e-1, rtol=1e-1), \
        "bf16 tiled-batch mismatch vs reference"

    print("KERNEL_OK")
</pallas_src>

<mosaic_0001>
module attributes {stable_mosaic.version = 11 : i64} {
  func.func @dueling_kernel(%arg0: i32, %arg1: memref<2x16xf32, #tpu.memory_space<vmem>>, %arg2: memref<16x128xf32, #tpu.memory_space<vmem>>, %arg3: memref<1x128xf32, #tpu.memory_space<vmem>>, %arg4: memref<128x256xf32, #tpu.memory_space<vmem>>, %arg5: memref<1x256xf32, #tpu.memory_space<vmem>>, %arg6: memref<256x8xf32, #tpu.memory_space<vmem>>, %arg7: memref<1x8xf32, #tpu.memory_space<vmem>>, %arg8: memref<2x8xf32, #tpu.memory_space<vmem>>) attributes {dimension_semantics = [#tpu.dimension_semantics<parallel>], iteration_bounds = array<i64: 1>, scalar_prefetch = 0 : i64, scratch_operands = 0 : i64, tpu.core_type = #tpu.core_type<tc>, window_params = [{transform_indices = @transform_0, window_bounds = array<i64: 2, 16>}, {pipeline_mode = #tpu.pipeline_mode<synchronous>, transform_indices = @transform_1, window_bounds = array<i64: 16, 128>}, {pipeline_mode = #tpu.pipeline_mode<synchronous>, transform_indices = @transform_2, window_bounds = array<i64: 1, 128>}, {pipeline_mode = #tpu.pipeline_mode<synchronous>, transform_indices = @transform_3, window_bounds = array<i64: 128, 256>}, {pipeline_mode = #tpu.pipeline_mode<synchronous>, transform_indices = @transform_4, window_bounds = array<i64: 1, 256>}, {pipeline_mode = #tpu.pipeline_mode<synchronous>, transform_indices = @transform_5, window_bounds = array<i64: 256, 8>}, {pipeline_mode = #tpu.pipeline_mode<synchronous>, transform_indices = @transform_6, window_bounds = array<i64: 1, 8>}, {transform_indices = @transform_7, window_bounds = array<i64: 2, 8>}]} {
    %c0 = arith.constant 0 : index
    %c0_0 = arith.constant 0 : index
    %0 = vector.load %arg1[%c0, %c0_0] : memref<2x16xf32, #tpu.memory_space<vmem>>, vector<2x16xf32>
    %c0_1 = arith.constant 0 : index
    %c0_2 = arith.constant 0 : index
    %1 = vector.load %arg2[%c0_1, %c0_2] : memref<16x128xf32, #tpu.memory_space<vmem>>, vector<16x128xf32>
    %cst = arith.constant dense<0.000000e+00> : vector<2x128xf32>
    %2 = tpu.matmul %0, %1, %cst {dimension_numbers = #tpu.dot_dimension_numbers<[1], [0], [0], [1], [0, 0, 1, 1], [], []>} : vector<2x16xf32>, vector<16x128xf32>, vector<2x128xf32> -> vector<2x128xf32>
    %c0_3 = arith.constant 0 : index
    %c0_4 = arith.constant 0 : index
    %3 = vector.load %arg3[%c0_3, %c0_4] : memref<1x128xf32, #tpu.memory_space<vmem>>, vector<1x128xf32>
    %4 = vector.broadcast %3 : vector<1x128xf32> to vector<2x128xf32>
    %5 = arith.addf %2, %4 : vector<2x128xf32>
    %cst_5 = arith.constant 0.000000e+00 : f32
    %6 = vector.broadcast %cst_5 : f32 to vector<2x128xf32>
    %7 = arith.maximumf %5, %6 : vector<2x128xf32>
    %c0_6 = arith.constant 0 : index
    %c0_7 = arith.constant 0 : index
    %8 = vector.load %arg4[%c0_6, %c0_7] : memref<128x256xf32, #tpu.memory_space<vmem>>, vector<128x256xf32>
    %cst_8 = arith.constant dense<0.000000e+00> : vector<2x256xf32>
    %9 = tpu.matmul %7, %8, %cst_8 {dimension_numbers = #tpu.dot_dimension_numbers<[1], [0], [0], [1], [0, 0, 1, 1], [], []>} : vector<2x128xf32>, vector<128x256xf32>, vector<2x256xf32> -> vector<2x256xf32>
    %c0_9 = arith.constant 0 : index
    %c0_10 = arith.constant 0 : index
    %10 = vector.load %arg5[%c0_9, %c0_10] : memref<1x256xf32, #tpu.memory_space<vmem>>, vector<1x256xf32>
    %11 = vector.broadcast %10 : vector<1x256xf32> to vector<2x256xf32>
    %12 = arith.addf %9, %11 : vector<2x256xf32>
    %cst_11 = arith.constant 0.000000e+00 : f32
    %13 = vector.broadcast %cst_11 : f32 to vector<2x256xf32>
    %14 = arith.maximumf %12, %13 : vector<2x256xf32>
    %c0_12 = arith.constant 0 : index
    %c0_13 = arith.constant 0 : index
    %15 = vector.load %arg6[%c0_12, %c0_13] : memref<256x8xf32, #tpu.memory_space<vmem>>, vector<256x8xf32>
    %cst_14 = arith.constant dense<0.000000e+00> : vector<2x8xf32>
    %16 = tpu.matmul %14, %15, %cst_14 {dimension_numbers = #tpu.dot_dimension_numbers<[1], [0], [0], [1], [0, 0, 1, 1], [], []>} : vector<2x256xf32>, vector<256x8xf32>, vector<2x8xf32> -> vector<2x8xf32>
    %c0_15 = arith.constant 0 : index
    %c0_16 = arith.constant 0 : index
    %17 = vector.load %arg7[%c0_15, %c0_16] : memref<1x8xf32, #tpu.memory_space<vmem>>, vector<1x8xf32>
    %18 = vector.broadcast %17 : vector<1x8xf32> to vector<2x8xf32>
    %19 = arith.addf %16, %18 : vector<2x8xf32>
    %c0_17 = arith.constant 0 : index
    %c0_18 = arith.constant 0 : index
    %20 = vector.load %arg8[%c0_17, %c0_18] : memref<2x8xf32, #tpu.memory_space<vmem>>, vector<2x8xf32>
    tpu.vector_store %arg8[%c0_17, %c0_18], %19 {strides = array<i32>} : memref<2x8xf32, #tpu.memory_space<vmem>>, vector<2x8xf32>,
    return
  }
  func.func @transform_0(%arg0: i32) -> (i32, i32) {
    %c0_i32 = arith.constant 0 : i32
    %c0_i32_0 = arith.constant 0 : i32
    return %arg0, %c0_i32 : i32, i32
  }
  func.func @transform_1(%arg0: i32) -> (i32, i32) {
    %c0_i32 = arith.constant 0 : i32
    %c0_i32_0 = arith.constant 0 : i32
    %c0_i32_1 = arith.constant 0 : i32
    return %c0_i32, %c0_i32_0 : i32, i32
  }
  func.func @transform_2(%arg0: i32) -> (i32, i32) {
    %c0_i32 = arith.constant 0 : i32
    %c0_i32_0 = arith.constant 0 : i32
    %c0_i32_1 = arith.constant 0 : i32
    return %c0_i32, %c0_i32_0 : i32, i32
  }
  func.func @transform_3(%arg0: i32) -> (i32, i32) {
    %c0_i32 = arith.constant 0 : i32
    %c0_i32_0 = arith.constant 0 : i32
    %c0_i32_1 = arith.constant 0 : i32
    return %c0_i32, %c0_i32_0 : i32, i32
  }
  func.func @transform_4(%arg0: i32) -> (i32, i32) {
    %c0_i32 = arith.constant 0 : i32
    %c0_i32_0 = arith.constant 0 : i32
    %c0_i32_1 = arith.constant 0 : i32
    return %c0_i32, %c0_i32_0 : i32, i32
  }
  func.func @transform_5(%arg0: i32) -> (i32, i32) {
    %c0_i32 = arith.constant 0 : i32
    %c0_i32_0 = arith.constant 0 : i32
    %c0_i32_1 = arith.constant 0 : i32
    return %c0_i32, %c0_i32_0 : i32, i32
  }
  func.func @transform_6(%arg0: i32) -> (i32, i32) {
    %c0_i32 = arith.constant 0 : i32
    %c0_i32_0 = arith.constant 0 : i32
    %c0_i32_1 = arith.constant 0 : i32
    return %c0_i32, %c0_i32_0 : i32, i32
  }
  func.func @transform_7(%arg0: i32) -> (i32, i32) {
    %c0_i32 = arith.constant 0 : i32
    %c0_i32_0 = arith.constant 0 : i32
    return %arg0, %c0_i32 : i32, i32
  }
}

</mosaic_0001>

<llo_original>
// kernel: dueling_forward.1
$region0: #{dueling_forward.1}
  #allocation0 [shape = 'u32[]', space=smem, size = 0x4, offset = 0x4, fixed_abs, tag = 'smem constant byte address 0x4 - core index']
  #allocation1 [shape = 'u32[72,128]{1,0:T(1,128)}', space=vmem, size = 0x9000, scoped, tag = 'internal scratch']
  %s0 = inlined_call_operand.vmem [shape: f32[2,16], index: 0, kind: input, shape index: {}]
  %s1 = inlined_call_operand.vmem [shape: f32[16,128], index: 1, kind: input, shape index: {}]
  %s2 = inlined_call_operand.vmem [shape: f32[1,128], index: 2, kind: input, shape index: {}]
  %s3 = inlined_call_operand.vmem [shape: f32[128,256], index: 3, kind: input, shape index: {}]
  %s4 = inlined_call_operand.vmem [shape: f32[1,256], index: 4, kind: input, shape index: {}]
  %s5 = inlined_call_operand.vmem [shape: f32[256,8], index: 5, kind: input, shape index: {}]
  %s6 = inlined_call_operand.hbm [shape: f32[1,8], index: 6, kind: input, shape index: {}]
  %s7 = inlined_call_operand.hbm [shape: f32[2,8], index: 7, kind: output, shape index: {}]
  %s8 = sld [smem:[#allocation0]]
  $region42: #{dueling_forward.1} parent=0
    _
  %s10 = ssub.s32 1, %s8
  %s11 = scalar_select 0, %s10, %s8
  $region1: #{dueling_forward.1} parent=0
    #allocation2 [shape = 'u8[512]{0}', space=vmem, size = 0x400, scoped, tag = 'input window, operand 6, single buffered']
    #allocation3 [shape = 's32[1]{0}', space=sflag, size = 0x4, scoped, tag = 'scoped memory for dueling_forward.1']
    #allocation4 [shape = 's32[1]{0}', space=sflag, size = 0x4, scoped, tag = 'scoped memory for dueling_forward.1']
    #allocation5 [shape = 'u8[1024]{0}', space=vmem, size = 0x400, scoped, tag = 'output window, operand 0, single buffered']
    %12 = vsyncpa [#allocation3], 0
    %13 = vsyncpa [#allocation4], 0
    // Predicated region
    $region2: #{dueling_forward.1} parent=1 // pred_check
      _
    $region3: #{dueling_forward.1} parent=1 // pred_check_branch
      %15 = sbr.rel (0) target = $region5
    $region4: #{dueling_forward.1} parent=1 // pred_region
      _
    $region5: #{dueling_forward.1} parent=1 // pred_fallthru
      _
    // Predicated region
    $region6: #{dueling_forward.1} parent=1 // pred_check
      _
    $region7: #{dueling_forward.1} parent=1 // pred_check_branch
      %17 = sbr.rel (0) target = $region9
    $region8: #{dueling_forward.1} parent=1 // pred_region
      _
    $region9: #{dueling_forward.1} parent=1 // pred_fallthru
      _
    // Predicated region
    $region10: #{dueling_forward.1} parent=1 // pred_check
      _
    $region11: #{dueling_forward.1} parent=1 // pred_check_branch
      %19 = sbr.rel (0) target = $region13
    $region12: #{dueling_forward.1} parent=1 // pred_region
      _
    $region13: #{dueling_forward.1} parent=1 // pred_fallthru
      _
    // Predicated region
    $region14: #{dueling_forward.1} parent=1 // pred_check
      _
    $region15: #{dueling_forward.1} parent=1 // pred_check_branch
      %21 = sbr.rel (0) target = $region17
    $region16: #{dueling_forward.1} parent=1 // pred_region
      _
    $region17: #{dueling_forward.1} parent=1 // pred_fallthru
      _
    // Predicated region
    $region18: #{dueling_forward.1} parent=1 // pred_check
      _
    $region19: #{dueling_forward.1} parent=1 // pred_check_branch
      %23 = sbr.rel (0) target = $region21
    $region20: #{dueling_forward.1} parent=1 // pred_region
      _
    $region21: #{dueling_forward.1} parent=1 // pred_fallthru
      _
    // Predicated region
    $region22: #{dueling_forward.1} parent=1 // pred_check
      _
    $region23: #{dueling_forward.1} parent=1 // pred_check_branch
      %25 = sbr.rel (0) target = $region25
    $region24: #{dueling_forward.1} parent=1 // pred_region
      _
    $region25: #{dueling_forward.1} parent=1 // pred_fallthru
      _
    // Predicated region
    $region26: #{dueling_forward.1} parent=1 // pred_check
      _
    $region27: #{dueling_forward.1} parent=1 // pred_check_branch
      %27 = sbr.rel (0) target = $region29
    $region28: #{dueling_forward.1} parent=1 // pred_region
      %29 = vsyncadd [#allocation3], 0
      %s31 = sshll.u32 %s6, 4
      %s32 = int_to_ptr.hbm [resolvable:$true] %s31
      %s33 = sshll.u32 [#allocation2], 4
      %s34 = int_to_ptr.vmem [resolvable:$true] %s33
      %36 = dma.hbm_to_vmem [thread:$0]  %s32, 16, %s34, [#allocation3]
    $region29: #{dueling_forward.1} parent=1 // pred_fallthru
      _
    // Predicated region
    $region30: #{dueling_forward.1} parent=1 // pred_check
      _
    $region31: #{dueling_forward.1} parent=1 // pred_check_branch
      %38 = sbr.rel (0) target = $region33
    $region32: #{dueling_forward.1} parent=1 // pred_region
      %40 = dma.done [#allocation3], 16
    $region33: #{dueling_forward.1} parent=1 // pred_fallthru
      _
    %v41 = vld [vmem:[%s0] sm:$0x3]
    %v42 = vld [vmem:[%s1] sm:$0xff]
    %v43 = vld [vmem:[%s1 + $0x8] sm:$0xff]
    %v44 = vld [vmem:[%s2] sm:$0x1]
    %v46 = vperm.slane %v44, 0
    %vm48 = vcmask 130048
    %v50 = vsel %vm48, %v41, 0
    %52 = vmatpush.msra.mxu0 0.0
    %53 = vmatpush.msra.mxu0 0.0
    %54 = vmatpush.msra.mxu0 0.0
    %55 = vmatpush.msra.mxu0 0.0
    %56 = vmatpush.msra.mxu0 0.0
    %57 = vmatpush.msra.mxu0 0.0
    %58 = vmatpush.msra.mxu0 0.0
    %59 = vmatpush.msra.mxu0 0.0
    %60 = vmatpush.msra.mxu0 0.0
    %61 = vmatpush.msra.mxu0 0.0
    %62 = vmatpush.msra.mxu0 0.0
    %63 = vmatpush.msra.mxu0 0.0
    %64 = vmatpush.msra.mxu0 0.0
    %65 = vmatpush.msra.mxu0 0.0
    %66 = vmatpush.msra.mxu0 %v43
    %67 = vmatpush.msra.mxu0 %v42
    %68 = vmatmul.f32.gmra.mxu0 %v50
    %v69 = vpop.f32.mrf.mxu0
    %v70 = vadd.f32 %v46, %v69
    %71 = vdwg.mxu0
    %v72 = vmax.f32 %v70, 0.0
    %v73 = vld [vmem:[%s3] sm:$0xff]
    %v74 = vld [vmem:[%s3 + $0x8] sm:$0xff]
    %v75 = vld [vmem:[%s3 + $0x10] sm:$0xff]
    %v76 = vld [vmem:[%s3 + $0x18] sm:$0xff]
    %v77 = vld [vmem:[%s3 + $0x20] sm:$0xff]
    %v78 = vld [vmem:[%s3 + $0x28] sm:$0xff]
    %v79 = vld [vmem:[%s3 + $0x30] sm:$0xff]
    %v80 = vld [vmem:[%s3 + $0x38] sm:$0xff]
    %v81 = vld [vmem:[%s3 + $0x40] sm:$0xff]
    %v82 = vld [vmem:[%s3 + $0x48] sm:$0xff]
    %v83 = vld [vmem:[%s3 + $0x50] sm:$0xff]
    %v84 = vld [vmem:[%s3 + $0x58] sm:$0xff]
    %v85 = vld [vmem:[%s3 + $0x60] sm:$0xff]
    %v86 = vld [vmem:[%s3 + $0x68] sm:$0xff]
    %v87 = vld [vmem:[%s3 + $0x70] sm:$0xff]
    %v88 = vld [vmem:[%s3 + $0x78] sm:$0xff]
    %v89 = vld [vmem:[%s3 + $0x80] sm:$0xff]
    %v90 = vld [vmem:[%s3 + $0x88] sm:$0xff]
    %v91 = vld [vmem:[%s3 + $0x90] sm:$0xff]
    %v92 = vld [vmem:[%s3 + $0x98] sm:$0xff]
    %v93 = vld [vmem:[%s3 + $0xa0] sm:$0xff]
    %v94 = vld [vmem:[%s3 + $0xa8] sm:$0xff]
    %v95 = vld [vmem:[%s3 + $0xb0] sm:$0xff]
    %v96 = vld [vmem:[%s3 + $0xb8] sm:$0xff]
    %v97 = vld [vmem:[%s3 + $0xc0] sm:$0xff]
    %v98 = vld [vmem:[%s3 + $0xc8] sm:$0xff]
    %v99 = vld [vmem:[%s3 + $0xd0] sm:$0xff]
    %v100 = vld [vmem:[%s3 + $0xd8] sm:$0xff]
    %v101 = vld [vmem:[%s3 + $0xe0] sm:$0xff]
    %v102 = vld [vmem:[%s3 + $0xe8] sm:$0xff]
    %v103 = vld [vmem:[%s3 + $0xf0] sm:$0xff]
    %v104 = vld [vmem:[%s3 + $0xf8] sm:$0xff]
    %v105 = vld [vmem:[%s4] sm:$0x3]
    %v107 = vperm.slane %v105, 0
    %v108 = vperm.slane %v105, 1
    %111 = vmatpush.msra.mxu0 %v103
    %112 = vmatpush.msra.mxu0 %v101
    %113 = vmatpush.msra.mxu0 %v99
    %114 = vmatpush.msra.mxu0 %v97
    %115 = vmatpush.msra.mxu0 %v95
    %116 = vmatpush.msra.mxu0 %v93
    %117 = vmatpush.msra.mxu0 %v91
    %118 = vmatpush.msra.mxu0 %v89
    %119 = vmatpush.msra.mxu0 %v87
    %120 = vmatpush.msra.mxu0 %v85
    %121 = vmatpush.msra.mxu0 %v83
    %122 = vmatpush.msra.mxu0 %v81
    %123 = vmatpush.msra.mxu0 %v79
    %124 = vmatpush.msra.mxu0 %v77
    %125 = vmatpush.msra.mxu0 %v75
    %126 = vmatpush.msra.mxu0 %v73
    %127 = vmatmul.f32.gmra.mxu0 %v72
    %v128 = vpop.f32.mrf.mxu0
    %v129 = vadd.f32 %v107, %v128
    %130 = vdwg.mxu0
    %131 = vmatpush.msra.mxu0 %v104
    %132 = vmatpush.msra.mxu0 %v102
    %133 = vmatpush.msra.mxu0 %v100
    %134 = vmatpush.msra.mxu0 %v98
    %135 = vmatpush.msra.mxu0 %v96
    %136 = vmatpush.msra.mxu0 %v94
    %137 = vmatpush.msra.mxu0 %v92
    %138 = vmatpush.msra.mxu0 %v90
    %139 = vmatpush.msra.mxu0 %v88
    %140 = vmatpush.msra.mxu0 %v86
    %141 = vmatpush.msra.mxu0 %v84
    %142 = vmatpush.msra.mxu0 %v82
    %143 = vmatpush.msra.mxu0 %v80
    %144 = vmatpush.msra.mxu0 %v78
    %145 = vmatpush.msra.mxu0 %v76
    %146 = vmatpush.msra.mxu0 %v74
    %147 = vmatmul.f32.gmra.mxu0 %v72
    %v148 = vpop.f32.mrf.mxu0
    %v149 = vadd.f32 %v108, %v148
    %150 = vdwg.mxu0
    %v151 = vmax.f32 %v129, 0.0
    %v152 = vmax.f32 %v149, 0.0
    %v153 = vld [vmem:[%s5] sm:$0xff]
    %v154 = vld [vmem:[%s5 + $0x8] sm:$0xff]
    %v155 = vld [vmem:[%s5 + $0x10] sm:$0xff]
    %v156 = vld [vmem:[%s5 + $0x18] sm:$0xff]
    %v157 = vld [vmem:[%s5 + $0x20] sm:$0xff]
    %v158 = vld [vmem:[%s5 + $0x28] sm:$0xff]
    %v159 = vld [vmem:[%s5 + $0x30] sm:$0xff]
    %v160 = vld [vmem:[%s5 + $0x38] sm:$0xff]
    %v161 = vld [vmem:[%s5 + $0x40] sm:$0xff]
    %v162 = vld [vmem:[%s5 + $0x48] sm:$0xff]
    %v163 = vld [vmem:[%s5 + $0x50] sm:$0xff]
    %v164 = vld [vmem:[%s5 + $0x58] sm:$0xff]
    %v165 = vld [vmem:[%s5 + $0x60] sm:$0xff]
    %v166 = vld [vmem:[%s5 + $0x68] sm:$0xff]
    %v167 = vld [vmem:[%s5 + $0x70] sm:$0xff]
    %v168 = vld [vmem:[%s5 + $0x78] sm:$0xff]
    %v169 = vld [vmem:[%s5 + $0x80] sm:$0xff]
    %v170 = vld [vmem:[%s5 + $0x88] sm:$0xff]
    %v171 = vld [vmem:[%s5 + $0x90] sm:$0xff]
    %v172 = vld [vmem:[%s5 + $0x98] sm:$0xff]
    %v173 = vld [vmem:[%s5 + $0xa0] sm:$0xff]
    %v174 = vld [vmem:[%s5 + $0xa8] sm:$0xff]
    %v175 = vld [vmem:[%s5 + $0xb0] sm:$0xff]
    %v176 = vld [vmem:[%s5 + $0xb8] sm:$0xff]
    %v177 = vld [vmem:[%s5 + $0xc0] sm:$0xff]
    %v178 = vld [vmem:[%s5 + $0xc8] sm:$0xff]
    %v179 = vld [vmem:[%s5 + $0xd0] sm:$0xff]
    %v180 = vld [vmem:[%s5 + $0xd8] sm:$0xff]
    %v181 = vld [vmem:[%s5 + $0xe0] sm:$0xff]
    %v182 = vld [vmem:[%s5 + $0xe8] sm:$0xff]
    %v183 = vld [vmem:[%s5 + $0xf0] sm:$0xff]
    %v184 = vld [vmem:[%s5 + $0xf8] sm:$0xff]
    %v185 = vld [vmem:[#allocation2] sm:$0x1]
    %v187 = vperm.slane %v185, 0
    %189 = vmatpush.msra.mxu0 %v168
    %190 = vmatpush.msra.mxu0 %v167
    %191 = vmatpush.msra.mxu0 %v166
    %192 = vmatpush.msra.mxu0 %v165
    %193 = vmatpush.msra.mxu0 %v164
    %194 = vmatpush.msra.mxu0 %v163
    %195 = vmatpush.msra.mxu0 %v162
    %196 = vmatpush.msra.mxu0 %v161
    %197 = vmatpush.msra.mxu0 %v160
    %198 = vmatpush.msra.mxu0 %v159
    %199 = vmatpush.msra.mxu0 %v158
    %200 = vmatpush.msra.mxu0 %v157
    %201 = vmatpush.msra.mxu0 %v156
    %202 = vmatpush.msra.mxu0 %v155
    %203 = vmatpush.msra.mxu0 %v154
    %204 = vmatpush.msra.mxu0 %v153
    %205 = vmatmul.f32.gmra.mxu0 %v151
    %v206 = vpop.f32.mrf.mxu0
    %v207 = vadd.f32 %v187, %v206
    %208 = vdwg.mxu0
    %209 = vmatpush.msra.mxu0 %v184
    %210 = vmatpush.msra.mxu0 %v183
    %211 = vmatpush.msra.mxu0 %v182
    %212 = vmatpush.msra.mxu0 %v181
    %213 = vmatpush.msra.mxu0 %v180
    %214 = vmatpush.msra.mxu0 %v179
    %215 = vmatpush.msra.mxu0 %v178
    %216 = vmatpush.msra.mxu0 %v177
    %217 = vmatpush.msra.mxu0 %v176
    %218 = vmatpush.msra.mxu0 %v175
    %219 = vmatpush.msra.mxu0 %v174
    %220 = vmatpush.msra.mxu0 %v173
    %221 = vmatpush.msra.mxu0 %v172
    %222 = vmatpush.msra.mxu0 %v171
    %223 = vmatpush.msra.mxu0 %v170
    %224 = vmatpush.msra.mxu0 %v169
    %225 = vmatmul.f32.gmra.mxu0 %v152
    %v226 = vpop.f32.mrf.mxu0
    %v227 = vadd.f32 %v207, %v226
    %228 = vdwg.mxu0
    %vm229 = vcmask 58368
    %230 = vst.msk [vmem:[#allocation5] sm:$0x3] %vm229, %v227
    // Predicated region
    $region34: #{dueling_forward.1} parent=1 // pred_check
      _
    $region35: #{dueling_forward.1} parent=1 // pred_check_branch
      %232 = sbr.rel (0) target = $region37
    $region36: #{dueling_forward.1} parent=1 // pred_region
      %234 = vsyncadd [#allocation4], 0
      %s236 = sshll.u32 [#allocation5], 4
      %s237 = int_to_ptr.vmem [resolvable:$true] %s236
      %s238 = sshll.u32 %s7, 4
      %s239 = int_to_ptr.hbm [resolvable:$true] %s238
      %241 = dma.vmem_to_hbm [thread:$0]  %s237, 32, %s239, [#allocation4]
    $region37: #{dueling_forward.1} parent=1 // pred_fallthru
      _
    // Predicated region
    $region38: #{dueling_forward.1} parent=1 // pred_check
      _
    $region39: #{dueling_forward.1} parent=1 // pred_check_branch
      %243 = sbr.rel (0) target = $region41
    $region40: #{dueling_forward.1} parent=1 // pred_region
      %245 = dma.done [#allocation4], 32
    $region41: #{dueling_forward.1} parent=1 // pred_fallthru
      _
    %246 = vsyncpa [#allocation3], 1
    %247 = vsyncpa [#allocation4], 1

</llo_original>
